<compile_context>
chip_gen: v7x
topology: tpu7x:2x2x1
jax: 0.10.0
libtpu: 0.0.40
codegen_flags: <defaults>
</compile_context>

<pallas_src>
import functools

import jax
import jax.numpy as jnp
from jax.experimental import pallas as pl
from jax.experimental.pallas import tpu as pltpu


def _round_up(x: int, n: int) -> int:
    return (x + n - 1) // n * n


def _qhead_kernel(obs_ref, ids_ref,
                  w1o_ref, w1i_ref, b1_ref,
                  w2_ref, b2_ref,
                  w3_ref, b3_ref,
                  q_ref):
    """Fused concat + 2-hidden-layer ReLU MLP + final linear on one row tile.

    obs_ref: (TM, D_obs) f32      ids_ref: (TM, N_agents) f32
    w1o_ref: (D_obs, H1p)         w1i_ref: (N_agents, H1p)   b1_ref: (1, H1p)
    w2_ref:  (H1p, H2p)           b2_ref: (1, H2p)
    w3_ref:  (H2p, A)             b3_ref: (1, A)
    q_ref:   (TM, A) f32
    """
    # First layer: concat([obs, ids]) @ W1 == obs @ W1_obs + ids @ W1_ids
    h1 = (jnp.dot(obs_ref[...], w1o_ref[...], preferred_element_type=jnp.float32)
          + jnp.dot(ids_ref[...], w1i_ref[...], preferred_element_type=jnp.float32)
          + b1_ref[...])
    h1 = jnp.maximum(h1, 0.0)

    h2 = jnp.dot(h1, w2_ref[...], preferred_element_type=jnp.float32) + b2_ref[...]
    h2 = jnp.maximum(h2, 0.0)

    q_ref[...] = (jnp.dot(h2, w3_ref[...], preferred_element_type=jnp.float32)
                  + b3_ref[...])


@functools.partial(jax.jit, static_argnames=("tm",))
def dcg_qhead_pallas(obs, ids, w1o, w1i, b1, w2, b2, w3, b3, *, tm=512):
    """obs: (M, D_obs) f32, ids: (M, N_agents) f32 -> evalQ (M, A) f32."""
    m, d_obs = obs.shape
    n_agents = ids.shape[1]
    h1p = w1o.shape[1]
    h2p = w2.shape[1]
    a = w3.shape[1]

    # Row tile: multiple of 8 sublanes, capped at 512 rows.  Double-buffered
    # in/out tiles at TM=512 stay far under the 16/32 MiB default scoped VMEM
    # on v5e / v6e / v7x, so no vmem_limit_bytes override is needed.
    tm = min(tm, _round_up(m, 8))
    m_pad = _round_up(m, tm)
    if m_pad != m:
        obs = jnp.pad(obs, ((0, m_pad - m), (0, 0)))
        ids = jnp.pad(ids, ((0, m_pad - m), (0, 0)))

    grid = (m_pad // tm,)

    row_spec = lambda width: pl.BlockSpec((tm, width), lambda i: (i, 0))
    # Weights / biases: same block for every grid step -> VMEM-resident.
    const_spec = lambda shp: pl.BlockSpec(shp, lambda i: (0, 0))

    flops = 2 * m_pad * (d_obs * h1p + n_agents * h1p + h1p * h2p + h2p * a)
    bytes_accessed = 4 * (m_pad * (d_obs + n_agents + a)
                          + d_obs * h1p + n_agents * h1p + h1p
                          + h1p * h2p + h2p + h2p * a + a)

    q = pl.pallas_call(
        _qhead_kernel,
        out_shape=jax.ShapeDtypeStruct((m_pad, a), jnp.float32),
        grid=grid,
        in_specs=[
            row_spec(d_obs),
            row_spec(n_agents),
            const_spec((d_obs, h1p)), const_spec((n_agents, h1p)),
            const_spec((1, h1p)),
            const_spec((h1p, h2p)), const_spec((1, h2p)),
            const_spec((h2p, a)), const_spec((1, a)),
        ],
        out_specs=row_spec(a),
        compiler_params=pltpu.CompilerParams(
            dimension_semantics=("parallel",)),
        cost_estimate=pl.CostEstimate(
            flops=flops, transcendentals=0, bytes_accessed=bytes_accessed),
    )(obs, ids, w1o, w1i, b1, w2, b2, w3, b3)

    return q[:m]


class DCGPolicyPallas:
    """JAX/Pallas re-implementation of DCG_policy's forward() hot path."""

    _LANE = 128  # pad hidden widths to full lanes (free on the MXU)

    def __init__(self, obs_dim, n_agents, action_dim, hidden_sizes=(32, 32),
                 seed=0):
        self.obs_dim = obs_dim
        self.n_agents = n_agents
        self.action_dim = action_dim
        d_in = obs_dim + n_agents  # state_dim + n_agents (BasicQhead input)

        # --- nn.Linear-style init (unpadded "logical" parameters) ---
        key = jax.random.PRNGKey(seed)
        sizes = [d_in] + list(hidden_sizes) + [action_dim]
        params = []
        for i in range(len(sizes) - 1):
            key, kw, kb = jax.random.split(key, 3)
            bound = 1.0 / jnp.sqrt(jnp.float32(sizes[i]))
            w = jax.random.uniform(kw, (sizes[i], sizes[i + 1]), jnp.float32,
                                   -bound, bound)
            b = jax.random.uniform(kb, (1, sizes[i + 1]), jnp.float32,
                                   -bound, bound)
            params.extend([w, b])
        (self.w1, self.b1, self.w2, self.b2, self.w3, self.b3) = params

        # --- kernel-side parameters: split W1 along concat axis, pad hidden
        #     dims to 128 lanes with zeros (numerically identical output). ---
        h1, h2 = hidden_sizes
        h1p = max(self._LANE, _round_up(h1, self._LANE))
        h2p = max(self._LANE, _round_up(h2, self._LANE))

        self.w1_obs = jnp.zeros((obs_dim, h1p), jnp.float32).at[:, :h1].set(
            self.w1[:obs_dim])
        self.w1_ids = jnp.zeros((n_agents, h1p), jnp.float32).at[:, :h1].set(
            self.w1[obs_dim:])
        self.b1p = jnp.zeros((1, h1p), jnp.float32).at[:, :h1].set(self.b1)
        self.w2p = jnp.zeros((h1p, h2p), jnp.float32).at[:h1, :h2].set(self.w2)
        self.b2p = jnp.zeros((1, h2p), jnp.float32).at[:, :h2].set(self.b2)
        self.w3p = jnp.zeros((h2p, action_dim), jnp.float32).at[:h2, :].set(
            self.w3)
        self.b3p = self.b3

    def __call__(self, observation, agent_ids):
        # representation: Basic_Identical -> identity on the observation
        outputs = {"state": observation}

        lead = observation.shape[:-1]
        obs = observation.reshape(-1, self.obs_dim).astype(jnp.float32)
        ids = agent_ids.reshape(-1, self.n_agents).astype(jnp.float32)

        q_flat = dcg_qhead_pallas(
            obs, ids,
            self.w1_obs, self.w1_ids, self.b1p,
            self.w2p, self.b2p, self.w3p, self.b3p)

        evalQ = q_flat.reshape(*lead, self.action_dim)
        # Argmax over a tiny (.., A) tensor: fused by XLA in the wrapper;
        # keeping it out of the kernel avoids a lane-width-1 masked store.
        argmax_action = jnp.argmax(evalQ, axis=-1).astype(jnp.int32)
        return outputs, argmax_action, evalQ

    # TODO(synk): utility / payoffs / coordination-graph / bias heads and
    # copy_target are training-time structures not exercised by forward();
    # only the forward() Q-head hot path is implemented as a kernel.


def _reference(policy, observation, agent_ids):
    x = jnp.concatenate([observation, agent_ids], axis=-1).astype(jnp.float32)
    h1 = jnp.maximum(x @ policy.w1 + policy.b1[0], 0.0)
    h2 = jnp.maximum(h1 @ policy.w2 + policy.b2[0], 0.0)
    q = h2 @ policy.w3 + policy.b3[0]
    return q, jnp.argmax(q, axis=-1).astype(jnp.int32)


if __name__ == "__main__":
    batch, n_agents, obs_dim, action_dim = 2, 4, 16, 8
    key = jax.random.PRNGKey(0)
    k_obs, _ = jax.random.split(key)

    observation = jax.random.normal(k_obs, (batch, n_agents, obs_dim),
                                    dtype=jnp.float32)
    agent_ids = jnp.tile(jnp.eye(n_agents, dtype=jnp.float32)[None],
                         (batch, 1, 1))  # one-hot agent ids

    policy = DCGPolicyPallas(obs_dim, n_agents, action_dim,
                             hidden_sizes=(32, 32), seed=0)

    outputs, argmax_action, evalQ = policy(observation, agent_ids)
    jax.block_until_ready((argmax_action, evalQ))

    q_ref, arg_ref = _reference(policy, observation, agent_ids)
    assert evalQ.shape == (batch, n_agents, action_dim)
    assert argmax_action.shape == (batch, n_agents)
    assert jnp.allclose(evalQ, q_ref, atol=1e-4, rtol=1e-4)
    assert jnp.array_equal(argmax_action, arg_ref)

    print("KERNEL_OK")
</pallas_src>

<mosaic_0001>
module attributes {stable_mosaic.version = 11 : i64} {
  func.func @_qhead_kernel(%arg0: i32, %arg1: memref<8x16xf32, #tpu.memory_space<vmem>>, %arg2: memref<8x4xf32, #tpu.memory_space<vmem>>, %arg3: memref<16x128xf32, #tpu.memory_space<vmem>>, %arg4: memref<4x128xf32, #tpu.memory_space<vmem>>, %arg5: memref<1x128xf32, #tpu.memory_space<vmem>>, %arg6: memref<128x128xf32, #tpu.memory_space<vmem>>, %arg7: memref<1x128xf32, #tpu.memory_space<vmem>>, %arg8: memref<128x8xf32, #tpu.memory_space<vmem>>, %arg9: memref<1x8xf32, #tpu.memory_space<vmem>>, %arg10: memref<8x8xf32, #tpu.memory_space<vmem>>) attributes {dimension_semantics = [#tpu.dimension_semantics<parallel>], iteration_bounds = array<i64: 1>, scalar_prefetch = 0 : i64, scratch_operands = 0 : i64, tpu.core_type = #tpu.core_type<tc>, window_params = [{transform_indices = @transform_0, window_bounds = array<i64: 8, 16>}, {transform_indices = @transform_1, window_bounds = array<i64: 8, 4>}, {pipeline_mode = #tpu.pipeline_mode<synchronous>, transform_indices = @transform_2, window_bounds = array<i64: 16, 128>}, {pipeline_mode = #tpu.pipeline_mode<synchronous>, transform_indices = @transform_3, window_bounds = array<i64: 4, 128>}, {pipeline_mode = #tpu.pipeline_mode<synchronous>, transform_indices = @transform_4, window_bounds = array<i64: 1, 128>}, {pipeline_mode = #tpu.pipeline_mode<synchronous>, transform_indices = @transform_5, window_bounds = array<i64: 128, 128>}, {pipeline_mode = #tpu.pipeline_mode<synchronous>, transform_indices = @transform_6, window_bounds = array<i64: 1, 128>}, {pipeline_mode = #tpu.pipeline_mode<synchronous>, transform_indices = @transform_7, window_bounds = array<i64: 128, 8>}, {pipeline_mode = #tpu.pipeline_mode<synchronous>, transform_indices = @transform_8, window_bounds = array<i64: 1, 8>}, {transform_indices = @transform_9, window_bounds = array<i64: 8, 8>}]} {
    %c0 = arith.constant 0 : index
    %c0_0 = arith.constant 0 : index
    %0 = vector.load %arg1[%c0, %c0_0] : memref<8x16xf32, #tpu.memory_space<vmem>>, vector<8x16xf32>
    %c0_1 = arith.constant 0 : index
    %c0_2 = arith.constant 0 : index
    %1 = vector.load %arg3[%c0_1, %c0_2] : memref<16x128xf32, #tpu.memory_space<vmem>>, vector<16x128xf32>
    %cst = arith.constant dense<0.000000e+00> : vector<8x128xf32>
    %2 = tpu.matmul %0, %1, %cst {dimension_numbers = #tpu.dot_dimension_numbers<[1], [0], [0], [1], [0, 0, 1, 1], [], []>} : vector<8x16xf32>, vector<16x128xf32>, vector<8x128xf32> -> vector<8x128xf32>
    %c0_3 = arith.constant 0 : index
    %c0_4 = arith.constant 0 : index
    %3 = vector.load %arg2[%c0_3, %c0_4] : memref<8x4xf32, #tpu.memory_space<vmem>>, vector<8x4xf32>
    %c0_5 = arith.constant 0 : index
    %c0_6 = arith.constant 0 : index
    %4 = vector.load %arg4[%c0_5, %c0_6] : memref<4x128xf32, #tpu.memory_space<vmem>>, vector<4x128xf32>
    %cst_7 = arith.constant dense<0.000000e+00> : vector<8x128xf32>
    %5 = tpu.matmul %3, %4, %cst_7 {dimension_numbers = #tpu.dot_dimension_numbers<[1], [0], [0], [1], [0, 0, 1, 1], [], []>} : vector<8x4xf32>, vector<4x128xf32>, vector<8x128xf32> -> vector<8x128xf32>
    %6 = arith.addf %2, %5 : vector<8x128xf32>
    %c0_8 = arith.constant 0 : index
    %c0_9 = arith.constant 0 : index
    %7 = vector.load %arg5[%c0_8, %c0_9] : memref<1x128xf32, #tpu.memory_space<vmem>>, vector<1x128xf32>
    %8 = vector.broadcast %7 : vector<1x128xf32> to vector<8x128xf32>
    %9 = arith.addf %6, %8 : vector<8x128xf32>
    %cst_10 = arith.constant 0.000000e+00 : f32
    %10 = vector.broadcast %cst_10 : f32 to vector<8x128xf32>
    %11 = arith.maximumf %9, %10 : vector<8x128xf32>
    %c0_11 = arith.constant 0 : index
    %c0_12 = arith.constant 0 : index
    %12 = vector.load %arg6[%c0_11, %c0_12] : memref<128x128xf32, #tpu.memory_space<vmem>>, vector<128x128xf32>
    %cst_13 = arith.constant dense<0.000000e+00> : vector<8x128xf32>
    %13 = tpu.matmul %11, %12, %cst_13 {dimension_numbers = #tpu.dot_dimension_numbers<[1], [0], [0], [1], [0, 0, 1, 1], [], []>} : vector<8x128xf32>, vector<128x128xf32>, vector<8x128xf32> -> vector<8x128xf32>
    %c0_14 = arith.constant 0 : index
    %c0_15 = arith.constant 0 : index
    %14 = vector.load %arg7[%c0_14, %c0_15] : memref<1x128xf32, #tpu.memory_space<vmem>>, vector<1x128xf32>
    %15 = vector.broadcast %14 : vector<1x128xf32> to vector<8x128xf32>
    %16 = arith.addf %13, %15 : vector<8x128xf32>
    %cst_16 = arith.constant 0.000000e+00 : f32
    %17 = vector.broadcast %cst_16 : f32 to vector<8x128xf32>
    %18 = arith.maximumf %16, %17 : vector<8x128xf32>
    %c0_17 = arith.constant 0 : index
    %c0_18 = arith.constant 0 : index
    %19 = vector.load %arg8[%c0_17, %c0_18] : memref<128x8xf32, #tpu.memory_space<vmem>>, vector<128x8xf32>
    %cst_19 = arith.constant dense<0.000000e+00> : vector<8x8xf32>
    %20 = tpu.matmul %18, %19, %cst_19 {dimension_numbers = #tpu.dot_dimension_numbers<[1], [0], [0], [1], [0, 0, 1, 1], [], []>} : vector<8x128xf32>, vector<128x8xf32>, vector<8x8xf32> -> vector<8x8xf32>
    %c0_20 = arith.constant 0 : index
    %c0_21 = arith.constant 0 : index
    %21 = vector.load %arg9[%c0_20, %c0_21] : memref<1x8xf32, #tpu.memory_space<vmem>>, vector<1x8xf32>
    %22 = vector.broadcast %21 : vector<1x8xf32> to vector<8x8xf32>
    %23 = arith.addf %20, %22 : vector<8x8xf32>
    %c0_22 = arith.constant 0 : index
    %c0_23 = arith.constant 0 : index
    %24 = vector.load %arg10[%c0_22, %c0_23] : memref<8x8xf32, #tpu.memory_space<vmem>>, vector<8x8xf32>
    tpu.vector_store %arg10[%c0_22, %c0_23], %23 {strides = array<i32>} : memref<8x8xf32, #tpu.memory_space<vmem>>, vector<8x8xf32>,
    return
  }
  func.func @transform_0(%arg0: i32) -> (i32, i32) {
    %c0_i32 = arith.constant 0 : i32
    %c0_i32_0 = arith.constant 0 : i32
    return %arg0, %c0_i32 : i32, i32
  }
  func.func @transform_1(%arg0: i32) -> (i32, i32) {
    %c0_i32 = arith.constant 0 : i32
    %c0_i32_0 = arith.constant 0 : i32
    return %arg0, %c0_i32 : i32, i32
  }
  func.func @transform_2(%arg0: i32) -> (i32, i32) {
    %c0_i32 = arith.constant 0 : i32
    %c0_i32_0 = arith.constant 0 : i32
    %c0_i32_1 = arith.constant 0 : i32
    return %c0_i32, %c0_i32_0 : i32, i32
  }
  func.func @transform_3(%arg0: i32) -> (i32, i32) {
    %c0_i32 = arith.constant 0 : i32
    %c0_i32_0 = arith.constant 0 : i32
    %c0_i32_1 = arith.constant 0 : i32
    return %c0_i32, %c0_i32_0 : i32, i32
  }
  func.func @transform_4(%arg0: i32) -> (i32, i32) {
    %c0_i32 = arith.constant 0 : i32
    %c0_i32_0 = arith.constant 0 : i32
    %c0_i32_1 = arith.constant 0 : i32
    return %c0_i32, %c0_i32_0 : i32, i32
  }
  func.func @transform_5(%arg0: i32) -> (i32, i32) {
    %c0_i32 = arith.constant 0 : i32
    %c0_i32_0 = arith.constant 0 : i32
    %c0_i32_1 = arith.constant 0 : i32
    return %c0_i32, %c0_i32_0 : i32, i32
  }
  func.func @transform_6(%arg0: i32) -> (i32, i32) {
    %c0_i32 = arith.constant 0 : i32
    %c0_i32_0 = arith.constant 0 : i32
    %c0_i32_1 = arith.constant 0 : i32
    return %c0_i32, %c0_i32_0 : i32, i32
  }
  func.func @transform_7(%arg0: i32) -> (i32, i32) {
    %c0_i32 = arith.constant 0 : i32
    %c0_i32_0 = arith.constant 0 : i32
    %c0_i32_1 = arith.constant 0 : i32
    return %c0_i32, %c0_i32_0 : i32, i32
  }
  func.func @transform_8(%arg0: i32) -> (i32, i32) {
    %c0_i32 = arith.constant 0 : i32
    %c0_i32_0 = arith.constant 0 : i32
    %c0_i32_1 = arith.constant 0 : i32
    return %c0_i32, %c0_i32_0 : i32, i32
  }
  func.func @transform_9(%arg0: i32) -> (i32, i32) {
    %c0_i32 = arith.constant 0 : i32
    %c0_i32_0 = arith.constant 0 : i32
    return %arg0, %c0_i32 : i32, i32
  }
}

</mosaic_0001>

<llo_original>
// kernel: dcg_qhead_pallas.1
$region0: #{dcg_qhead_pallas.1}
  #allocation0 [shape = 'u32[]', space=smem, size = 0x4, offset = 0x4, fixed_abs, tag = 'smem constant byte address 0x4 - core index']
  #allocation1 [shape = 'u32[144,128]{1,0:T(1,128)}', space=vmem, size = 0x12000, scoped, tag = 'internal scratch']
  %s0 = inlined_call_operand.vmem [shape: f32[8,16], index: 0, kind: input, shape index: {}]
  %s1 = inlined_call_operand.vmem [shape: f32[8,4], index: 1, kind: input, shape index: {}]
  %s2 = inlined_call_operand.vmem [shape: f32[16,128], index: 2, kind: input, shape index: {}]
  %s3 = inlined_call_operand.vmem [shape: f32[4,128], index: 3, kind: input, shape index: {}]
  %s4 = inlined_call_operand.vmem [shape: f32[1,128], index: 4, kind: input, shape index: {}]
  %s5 = inlined_call_operand.vmem [shape: f32[128,128], index: 5, kind: input, shape index: {}]
  %s6 = inlined_call_operand.vmem [shape: f32[1,128], index: 6, kind: input, shape index: {}]
  %s7 = inlined_call_operand.vmem [shape: f32[128,8], index: 7, kind: input, shape index: {}]
  %s8 = inlined_call_operand.vmem [shape: f32[1,8], index: 8, kind: input, shape index: {}]
  %s9 = inlined_call_operand.hbm [shape: f32[8,8], index: 9, kind: output, shape index: {}]
  %s10 = sld [smem:[#allocation0]]
  $region46: #{dcg_qhead_pallas.1} parent=0
    _
  %s12 = ssub.s32 1, %s10
  %s13 = scalar_select 0, %s12, %s10
  $region1: #{dcg_qhead_pallas.1} parent=0
    #allocation2 [shape = 'u8[4096]{0}', space=vmem, size = 0x1000, scoped, tag = 'output window, operand 0, single buffered']
    #allocation3 [shape = 's32[1]{0}', space=sflag, size = 0x4, scoped, tag = 'scoped memory for dcg_qhead_pallas.1']
    %14 = vsyncpa [#allocation3], 0
    // Predicated region
    $region2: #{dcg_qhead_pallas.1} parent=1 // pred_check
      _
    $region3: #{dcg_qhead_pallas.1} parent=1 // pred_check_branch
      %16 = sbr.rel (0) target = $region5
    $region4: #{dcg_qhead_pallas.1} parent=1 // pred_region
      _
    $region5: #{dcg_qhead_pallas.1} parent=1 // pred_fallthru
      _
    // Predicated region
    $region6: #{dcg_qhead_pallas.1} parent=1 // pred_check
      _
    $region7: #{dcg_qhead_pallas.1} parent=1 // pred_check_branch
      %18 = sbr.rel (0) target = $region9
    $region8: #{dcg_qhead_pallas.1} parent=1 // pred_region
      _
    $region9: #{dcg_qhead_pallas.1} parent=1 // pred_fallthru
      _
    // Predicated region
    $region10: #{dcg_qhead_pallas.1} parent=1 // pred_check
      _
    $region11: #{dcg_qhead_pallas.1} parent=1 // pred_check_branch
      %20 = sbr.rel (0) target = $region13
    $region12: #{dcg_qhead_pallas.1} parent=1 // pred_region
      _
    $region13: #{dcg_qhead_pallas.1} parent=1 // pred_fallthru
      _
    // Predicated region
    $region14: #{dcg_qhead_pallas.1} parent=1 // pred_check
      _
    $region15: #{dcg_qhead_pallas.1} parent=1 // pred_check_branch
      %22 = sbr.rel (0) target = $region17
    $region16: #{dcg_qhead_pallas.1} parent=1 // pred_region
      _
    $region17: #{dcg_qhead_pallas.1} parent=1 // pred_fallthru
      _
    // Predicated region
    $region18: #{dcg_qhead_pallas.1} parent=1 // pred_check
      _
    $region19: #{dcg_qhead_pallas.1} parent=1 // pred_check_branch
      %24 = sbr.rel (0) target = $region21
    $region20: #{dcg_qhead_pallas.1} parent=1 // pred_region
      _
    $region21: #{dcg_qhead_pallas.1} parent=1 // pred_fallthru
      _
    // Predicated region
    $region22: #{dcg_qhead_pallas.1} parent=1 // pred_check
      _
    $region23: #{dcg_qhead_pallas.1} parent=1 // pred_check_branch
      %26 = sbr.rel (0) target = $region25
    $region24: #{dcg_qhead_pallas.1} parent=1 // pred_region
      _
    $region25: #{dcg_qhead_pallas.1} parent=1 // pred_fallthru
      _
    // Predicated region
    $region26: #{dcg_qhead_pallas.1} parent=1 // pred_check
      _
    $region27: #{dcg_qhead_pallas.1} parent=1 // pred_check_branch
      %28 = sbr.rel (0) target = $region29
    $region28: #{dcg_qhead_pallas.1} parent=1 // pred_region
      _
    $region29: #{dcg_qhead_pallas.1} parent=1 // pred_fallthru
      _
    // Predicated region
    $region30: #{dcg_qhead_pallas.1} parent=1 // pred_check
      _
    $region31: #{dcg_qhead_pallas.1} parent=1 // pred_check_branch
      %30 = sbr.rel (0) target = $region33
    $region32: #{dcg_qhead_pallas.1} parent=1 // pred_region
      _
    $region33: #{dcg_qhead_pallas.1} parent=1 // pred_fallthru
      _
    // Predicated region
    $region34: #{dcg_qhead_pallas.1} parent=1 // pred_check
      _
    $region35: #{dcg_qhead_pallas.1} parent=1 // pred_check_branch
      %32 = sbr.rel (0) target = $region37
    $region36: #{dcg_qhead_pallas.1} parent=1 // pred_region
      _
    $region37: #{dcg_qhead_pallas.1} parent=1 // pred_fallthru
      _
    %v33 = vld [vmem:[%s0] sm:$0xff]
    %v34 = vld [vmem:[%s2] sm:$0xff]
    %v35 = vld [vmem:[%s2 + $0x8] sm:$0xff]
    %v36 = vld [vmem:[%s1] sm:$0xff]
    %v37 = vld [vmem:[%s3] sm:$0xf]
    %vm38 = vcmask 31744
    %v40 = vsel %vm38, %v36, 0
    %vm42 = vcmask 1043456
    %v44 = vsel %vm42, %v37, 0
    %46 = vmatprep.subr.mxu0 0.0
    %47 = vmatpush1.msra.mxu0 %v44
    %48 = vmatprep.subr.mxu0 0.0
    %49 = vmatpush1.msra.mxu0 0.0
    %50 = vmatprep.subr.mxu0 0.0
    %51 = vmatpush1.msra.mxu0 0.0
    %52 = vmatprep.subr.mxu0 0.0
    %53 = vmatpush1.msra.mxu0 0.0
    %54 = vmatprep.subr.mxu0 0.0
    %55 = vmatpush1.msra.mxu0 0.0
    %56 = vmatprep.subr.mxu0 0.0
    %57 = vmatpush1.msra.mxu0 0.0
    %58 = vmatprep.subr.mxu0 0.0
    %59 = vmatpush1.msra.mxu0 0.0
    %60 = vmatprep.subr.mxu0 0.0
    %61 = vmatpush1.msra.mxu0 0.0
    %62 = vmatprep.subr.mxu0 0.0
    %63 = vmatpush1.msra.mxu0 0.0
    %64 = vmatprep.subr.mxu0 0.0
    %65 = vmatpush1.msra.mxu0 0.0
    %66 = vmatprep.subr.mxu0 0.0
    %67 = vmatpush1.msra.mxu0 0.0
    %68 = vmatprep.subr.mxu0 0.0
    %69 = vmatpush1.msra.mxu0 0.0
    %70 = vmatprep.subr.mxu0 0.0
    %71 = vmatpush1.msra.mxu0 0.0
    %72 = vmatprep.subr.mxu0 0.0
    %73 = vmatpush1.msra.mxu0 0.0
    %74 = vmatprep.subr.mxu0 0.0
    %75 = vmatpush1.msra.mxu0 0.0
    %76 = vmatprep.subr.mxu0 0.0
    %77 = vmatpush1.msra.mxu0 0.0
    %78 = vmatprep.subr.mxu0 0.0
    %79 = vmatpush1.msra.mxu0 0.0
    %80 = vmatprep.subr.mxu0 0.0
    %81 = vmatpush1.msra.mxu0 0.0
    %82 = vmatprep.subr.mxu0 0.0
    %83 = vmatpush1.msra.mxu0 0.0
    %84 = vmatprep.subr.mxu0 0.0
    %85 = vmatpush1.msra.mxu0 0.0
    %86 = vmatprep.subr.mxu0 0.0
    %87 = vmatpush1.msra.mxu0 0.0
    %88 = vmatprep.subr.mxu0 0.0
    %89 = vmatpush1.msra.mxu0 0.0
    %90 = vmatprep.subr.mxu0 0.0
    %91 = vmatpush1.msra.mxu0 0.0
    %92 = vmatprep.subr.mxu0 0.0
    %93 = vmatpush1.msra.mxu0 0.0
    %94 = vmatprep.subr.mxu0 0.0
    %95 = vmatpush1.msra.mxu0 0.0
    %96 = vmatprep.subr.mxu0 0.0
    %97 = vmatpush1.msra.mxu0 0.0
    %98 = vmatprep.subr.mxu0 0.0
    %99 = vmatpush1.msra.mxu0 0.0
    %100 = vmatprep.subr.mxu0 0.0
    %101 = vmatpush1.msra.mxu0 0.0
    %102 = vmatprep.subr.mxu0 0.0
    %103 = vmatpush1.msra.mxu0 0.0
    %104 = vmatprep.subr.mxu0 0.0
    %105 = vmatpush1.msra.mxu0 0.0
    %106 = vmatprep.subr.mxu0 0.0
    %107 = vmatpush1.msra.mxu0 0.0
    %108 = vmatprep.subr.mxu0 0.0
    %109 = vmatpush1.msra.mxu0 0.0
    %110 = vmatprep.mubr.f32.mxu0 0.0
    %111 = vmatmul.mubr.f32.gmra.mrb[0].mxu0 %v40
    %v112 = vpop.f32.mrb[0].mxu0
    %v113 = vadd.f32 0.0, %v112
    %v114 = vpop.f32.mrb[0].mxu0
    %115 = vdwg.mxu0
    %vm116 = vcmask 130048
    %v118 = vsel %vm116, %v33, 0
    %120 = vmatprep.subr.mxu0 0.0
    %121 = vmatpush1.msra.mxu0 %v34
    %122 = vmatprep.subr.mxu0 0.0
    %123 = vmatpush1.msra.mxu0 %v35
    %124 = vmatprep.subr.mxu0 0.0
    %125 = vmatpush1.msra.mxu0 0.0
    %126 = vmatprep.subr.mxu0 0.0
    %127 = vmatpush1.msra.mxu0 0.0
    %128 = vmatprep.subr.mxu0 0.0
    %129 = vmatpush1.msra.mxu0 0.0
    %130 = vmatprep.subr.mxu0 0.0
    %131 = vmatpush1.msra.mxu0 0.0
    %132 = vmatprep.subr.mxu0 0.0
    %133 = vmatpush1.msra.mxu0 0.0
    %134 = vmatprep.subr.mxu0 0.0
    %135 = vmatpush1.msra.mxu0 0.0
    %136 = vmatprep.subr.mxu0 0.0
    %137 = vmatpush1.msra.mxu0 0.0
    %138 = vmatprep.subr.mxu0 0.0
    %139 = vmatpush1.msra.mxu0 0.0
    %140 = vmatprep.subr.mxu0 0.0
    %141 = vmatpush1.msra.mxu0 0.0
    %142 = vmatprep.subr.mxu0 0.0
    %143 = vmatpush1.msra.mxu0 0.0
    %144 = vmatprep.subr.mxu0 0.0
    %145 = vmatpush1.msra.mxu0 0.0
    %146 = vmatprep.subr.mxu0 0.0
    %147 = vmatpush1.msra.mxu0 0.0
    %148 = vmatprep.subr.mxu0 0.0
    %149 = vmatpush1.msra.mxu0 0.0
    %150 = vmatprep.subr.mxu0 0.0
    %151 = vmatpush1.msra.mxu0 0.0
    %152 = vmatprep.subr.mxu0 0.0
    %153 = vmatpush1.msra.mxu0 0.0
    %154 = vmatprep.subr.mxu0 0.0
    %155 = vmatpush1.msra.mxu0 0.0
    %156 = vmatprep.subr.mxu0 0.0
    %157 = vmatpush1.msra.mxu0 0.0
    %158 = vmatprep.subr.mxu0 0.0
    %159 = vmatpush1.msra.mxu0 0.0
    %160 = vmatprep.subr.mxu0 0.0
    %161 = vmatpush1.msra.mxu0 0.0
    %162 = vmatprep.subr.mxu0 0.0
    %163 = vmatpush1.msra.mxu0 0.0
    %164 = vmatprep.subr.mxu0 0.0
    %165 = vmatpush1.msra.mxu0 0.0
    %166 = vmatprep.subr.mxu0 0.0
    %167 = vmatpush1.msra.mxu0 0.0
    %168 = vmatprep.subr.mxu0 0.0
    %169 = vmatpush1.msra.mxu0 0.0
    %170 = vmatprep.subr.mxu0 0.0
    %171 = vmatpush1.msra.mxu0 0.0
    %172 = vmatprep.subr.mxu0 0.0
    %173 = vmatpush1.msra.mxu0 0.0
    %174 = vmatprep.subr.mxu0 0.0
    %175 = vmatpush1.msra.mxu0 0.0
    %176 = vmatprep.subr.mxu0 0.0
    %177 = vmatpush1.msra.mxu0 0.0
    %178 = vmatprep.subr.mxu0 0.0
    %179 = vmatpush1.msra.mxu0 0.0
    %180 = vmatprep.subr.mxu0 0.0
    %181 = vmatpush1.msra.mxu0 0.0
    %182 = vmatprep.subr.mxu0 0.0
    %183 = vmatpush1.msra.mxu0 0.0
    %184 = vmatprep.mubr.f32.mxu0 0.0
    %185 = vmatmul.mubr.f32.gmra.mrb[0].mxu0 %v118
    %v186 = vpop.f32.mrb[0].mxu0
    %v187 = vadd.f32 %v113, %v186
    %v188 = vpop.f32.mrb[0].mxu0
    %189 = vdwg.mxu0
    %v190 = vld [vmem:[%s4] sm:$0x1]
    %v192 = vlaneseq
    %v193 = vshrl.u32 %v192, 7
    %v194 = vsub.s32 0, %v193
    %v195 = vrot.slane %v190, %v194
    %v197 = vadd.f32 %v187, %v195
    %v198 = vmax.f32 %v197, 0.0
    %v199 = vld [vmem:[%s5] sm:$0xff]
    %v200 = vld [vmem:[%s5 + $0x8] sm:$0xff]
    %v201 = vld [vmem:[%s5 + $0x10] sm:$0xff]
    %v202 = vld [vmem:[%s5 + $0x18] sm:$0xff]
    %v203 = vld [vmem:[%s5 + $0x20] sm:$0xff]
    %v204 = vld [vmem:[%s5 + $0x28] sm:$0xff]
    %v205 = vld [vmem:[%s5 + $0x30] sm:$0xff]
    %v206 = vld [vmem:[%s5 + $0x38] sm:$0xff]
    %v207 = vld [vmem:[%s5 + $0x40] sm:$0xff]
    %v208 = vld [vmem:[%s5 + $0x48] sm:$0xff]
    %v209 = vld [vmem:[%s5 + $0x50] sm:$0xff]
    %v210 = vld [vmem:[%s5 + $0x58] sm:$0xff]
    %v211 = vld [vmem:[%s5 + $0x60] sm:$0xff]
    %v212 = vld [vmem:[%s5 + $0x68] sm:$0xff]
    %v213 = vld [vmem:[%s5 + $0x70] sm:$0xff]
    %v214 = vld [vmem:[%s5 + $0x78] sm:$0xff]
    %v215 = vld [vmem:[%s6] sm:$0x1]
    %v217 = vlaneseq
    %v218 = vshrl.u32 %v217, 7
    %v219 = vsub.s32 0, %v218
    %v220 = vrot.slane %v215, %v219
    %222 = vmatprep.subr.mxu0 0.0
    %223 = vmatpush1.msra.mxu0 %v199
    %224 = vmatprep.subr.mxu0 0.0
    %225 = vmatpush1.msra.mxu0 %v200
    %226 = vmatprep.subr.mxu0 0.0
    %227 = vmatpush1.msra.mxu0 %v201
    %228 = vmatprep.subr.mxu0 0.0
    %229 = vmatpush1.msra.mxu0 %v202
    %230 = vmatprep.subr.mxu0 0.0
    %231 = vmatpush1.msra.mxu0 %v203
    %232 = vmatprep.subr.mxu0 0.0
    %233 = vmatpush1.msra.mxu0 %v204
    %234 = vmatprep.subr.mxu0 0.0
    %235 = vmatpush1.msra.mxu0 %v205
    %236 = vmatprep.subr.mxu0 0.0
    %237 = vmatpush1.msra.mxu0 %v206
    %238 = vmatprep.subr.mxu0 0.0
    %239 = vmatpush1.msra.mxu0 %v207
    %240 = vmatprep.subr.mxu0 0.0
    %241 = vmatpush1.msra.mxu0 %v208
    %242 = vmatprep.subr.mxu0 0.0
    %243 = vmatpush1.msra.mxu0 %v209
    %244 = vmatprep.subr.mxu0 0.0
    %245 = vmatpush1.msra.mxu0 %v210
    %246 = vmatprep.subr.mxu0 0.0
    %247 = vmatpush1.msra.mxu0 %v211
    %248 = vmatprep.subr.mxu0 0.0
    %249 = vmatpush1.msra.mxu0 %v212
    %250 = vmatprep.subr.mxu0 0.0
    %251 = vmatpush1.msra.mxu0 %v213
    %252 = vmatprep.subr.mxu0 0.0
    %253 = vmatpush1.msra.mxu0 %v214
    %254 = vmatprep.subr.mxu0 0.0
    %255 = vmatpush1.msra.mxu0 0.0
    %256 = vmatprep.subr.mxu0 0.0
    %257 = vmatpush1.msra.mxu0 0.0
    %258 = vmatprep.subr.mxu0 0.0
    %259 = vmatpush1.msra.mxu0 0.0
    %260 = vmatprep.subr.mxu0 0.0
    %261 = vmatpush1.msra.mxu0 0.0
    %262 = vmatprep.subr.mxu0 0.0
    %263 = vmatpush1.msra.mxu0 0.0
    %264 = vmatprep.subr.mxu0 0.0
    %265 = vmatpush1.msra.mxu0 0.0
    %266 = vmatprep.subr.mxu0 0.0
    %267 = vmatpush1.msra.mxu0 0.0
    %268 = vmatprep.subr.mxu0 0.0
    %269 = vmatpush1.msra.mxu0 0.0
    %270 = vmatprep.subr.mxu0 0.0
    %271 = vmatpush1.msra.mxu0 0.0
    %272 = vmatprep.subr.mxu0 0.0
    %273 = vmatpush1.msra.mxu0 0.0
    %274 = vmatprep.subr.mxu0 0.0
    %275 = vmatpush1.msra.mxu0 0.0
    %276 = vmatprep.subr.mxu0 0.0
    %277 = vmatpush1.msra.mxu0 0.0
    %278 = vmatprep.subr.mxu0 0.0
    %279 = vmatpush1.msra.mxu0 0.0
    %280 = vmatprep.subr.mxu0 0.0
    %281 = vmatpush1.msra.mxu0 0.0
    %282 = vmatprep.subr.mxu0 0.0
    %283 = vmatpush1.msra.mxu0 0.0
    %284 = vmatprep.subr.mxu0 0.0
    %285 = vmatpush1.msra.mxu0 0.0
    %286 = vmatprep.mubr.f32.mxu0 0.0
    %287 = vmatmul.mubr.f32.gmra.mrb[0].mxu0 %v198
    %v288 = vpop.f32.mrb[0].mxu0
    %v289 = vadd.f32 %v220, %v288
    %v290 = vpop.f32.mrb[0].mxu0
    %291 = vdwg.mxu0
    %v292 = vmax.f32 %v289, 0.0
    %v293 = vld [vmem:[%s7] sm:$0xff]
    %v294 = vld [vmem:[%s7 + $0x8] sm:$0xff]
    %v295 = vld [vmem:[%s7 + $0x10] sm:$0xff]
    %v296 = vld [vmem:[%s7 + $0x18] sm:$0xff]
    %v297 = vld [vmem:[%s7 + $0x20] sm:$0xff]
    %v298 = vld [vmem:[%s7 + $0x28] sm:$0xff]
    %v299 = vld [vmem:[%s7 + $0x30] sm:$0xff]
    %v300 = vld [vmem:[%s7 + $0x38] sm:$0xff]
    %v301 = vld [vmem:[%s7 + $0x40] sm:$0xff]
    %v302 = vld [vmem:[%s7 + $0x48] sm:$0xff]
    %v303 = vld [vmem:[%s7 + $0x50] sm:$0xff]
    %v304 = vld [vmem:[%s7 + $0x58] sm:$0xff]
    %v305 = vld [vmem:[%s7 + $0x60] sm:$0xff]
    %v306 = vld [vmem:[%s7 + $0x68] sm:$0xff]
    %v307 = vld [vmem:[%s7 + $0x70] sm:$0xff]
    %v308 = vld [vmem:[%s7 + $0x78] sm:$0xff]
    %v309 = vld [vmem:[%s8] sm:$0x1]
    %v311 = vlaneseq
    %v312 = vshrl.u32 %v311, 7
    %v313 = vsub.s32 0, %v312
    %v314 = vrot.slane %v309, %v313
    %316 = vmatprep.subr.mxu0 0.0
    %317 = vmatpush1.msra.mxu0 %v293
    %318 = vmatprep.subr.mxu0 0.0
    %319 = vmatpush1.msra.mxu0 %v294
    %320 = vmatprep.subr.mxu0 0.0
    %321 = vmatpush1.msra.mxu0 %v295
    %322 = vmatprep.subr.mxu0 0.0
    %323 = vmatpush1.msra.mxu0 %v296
    %324 = vmatprep.subr.mxu0 0.0
    %325 = vmatpush1.msra.mxu0 %v297
    %326 = vmatprep.subr.mxu0 0.0
    %327 = vmatpush1.msra.mxu0 %v298
    %328 = vmatprep.subr.mxu0 0.0
    %329 = vmatpush1.msra.mxu0 %v299
    %330 = vmatprep.subr.mxu0 0.0
    %331 = vmatpush1.msra.mxu0 %v300
    %332 = vmatprep.subr.mxu0 0.0
    %333 = vmatpush1.msra.mxu0 %v301
    %334 = vmatprep.subr.mxu0 0.0
    %335 = vmatpush1.msra.mxu0 %v302
    %336 = vmatprep.subr.mxu0 0.0
    %337 = vmatpush1.msra.mxu0 %v303
    %338 = vmatprep.subr.mxu0 0.0
    %339 = vmatpush1.msra.mxu0 %v304
    %340 = vmatprep.subr.mxu0 0.0
    %341 = vmatpush1.msra.mxu0 %v305
    %342 = vmatprep.subr.mxu0 0.0
    %343 = vmatpush1.msra.mxu0 %v306
    %344 = vmatprep.subr.mxu0 0.0
    %345 = vmatpush1.msra.mxu0 %v307
    %346 = vmatprep.subr.mxu0 0.0
    %347 = vmatpush1.msra.mxu0 %v308
    %348 = vmatprep.subr.mxu0 0.0
    %349 = vmatpush1.msra.mxu0 0.0
    %350 = vmatprep.subr.mxu0 0.0
    %351 = vmatpush1.msra.mxu0 0.0
    %352 = vmatprep.subr.mxu0 0.0
    %353 = vmatpush1.msra.mxu0 0.0
    %354 = vmatprep.subr.mxu0 0.0
    %355 = vmatpush1.msra.mxu0 0.0
    %356 = vmatprep.subr.mxu0 0.0
    %357 = vmatpush1.msra.mxu0 0.0
    %358 = vmatprep.subr.mxu0 0.0
    %359 = vmatpush1.msra.mxu0 0.0
    %360 = vmatprep.subr.mxu0 0.0
    %361 = vmatpush1.msra.mxu0 0.0
    %362 = vmatprep.subr.mxu0 0.0
    %363 = vmatpush1.msra.mxu0 0.0
    %364 = vmatprep.subr.mxu0 0.0
    %365 = vmatpush1.msra.mxu0 0.0
    %366 = vmatprep.subr.mxu0 0.0
    %367 = vmatpush1.msra.mxu0 0.0
    %368 = vmatprep.subr.mxu0 0.0
    %369 = vmatpush1.msra.mxu0 0.0
    %370 = vmatprep.subr.mxu0 0.0
    %371 = vmatpush1.msra.mxu0 0.0
    %372 = vmatprep.subr.mxu0 0.0
    %373 = vmatpush1.msra.mxu0 0.0
    %374 = vmatprep.subr.mxu0 0.0
    %375 = vmatpush1.msra.mxu0 0.0
    %376 = vmatprep.subr.mxu0 0.0
    %377 = vmatpush1.msra.mxu0 0.0
    %378 = vmatprep.subr.mxu0 0.0
    %379 = vmatpush1.msra.mxu0 0.0
    %380 = vmatprep.mubr.f32.mxu0 0.0
    %381 = vmatmul.mubr.f32.gmra.mrb[0].mxu0 %v292
    %v382 = vpop.f32.mrb[0].mxu0
    %v383 = vadd.f32 %v314, %v382
    %v384 = vpop.f32.mrb[0].mxu0
    %385 = vdwg.mxu0
    %vm386 = vcmask 64512
    %387 = vst.msk [vmem:[#allocation2] sm:$0xff] %vm386, %v383
    // Predicated region
    $region38: #{dcg_qhead_pallas.1} parent=1 // pred_check
      _
    $region39: #{dcg_qhead_pallas.1} parent=1 // pred_check_branch
      %389 = sbr.rel (0) target = $region41
    $region40: #{dcg_qhead_pallas.1} parent=1 // pred_region
      %s391 = ssub.s32 128, 128
      %392 = vsyncadd [#allocation3], %s391
      %s394 = sshll.u32 [#allocation2], 4
      %s395 = int_to_ptr.vmem [resolvable:$true] %s394
      %397 = dma.vmem_to_hbm [thread:$0]  %s395, 128, %s9, [#allocation3]
    $region41: #{dcg_qhead_pallas.1} parent=1 // pred_fallthru
      _
    // Predicated region
    $region42: #{dcg_qhead_pallas.1} parent=1 // pred_check
      _
    $region43: #{dcg_qhead_pallas.1} parent=1 // pred_check_branch
      %399 = sbr.rel (0) target = $region45
    $region44: #{dcg_qhead_pallas.1} parent=1 // pred_region
      %400 = dma.done [#allocation3], 128
    $region45: #{dcg_qhead_pallas.1} parent=1 // pred_fallthru
      _
    %401 = vsyncpa [#allocation3], 1

</llo_original>
